<compile_context>
chip_gen: v7x
topology: tpu7x:2x2x1
jax: 0.10.0
libtpu: 0.0.40
codegen_flags: <defaults>
</compile_context>

<pallas_src>
import math

import jax
import jax.numpy as jnp
from jax.experimental import pallas as pl
from jax.experimental.pallas import tpu as pltpu


DIMS = (4, 8, 8, 4, 1)           # arch '4x8x8x4x1'
LANES = 128
assert LANES % DIMS[0] == 0
GROUPS = LANES // DIMS[0]        # 32 batch elements per 128-lane row


# ------------------------------- kernel -----------------------------------

def make_mlp_kernel(n_layers):
    def kernel(*refs):
        x_ref, o_ref = refs[0], refs[-1]
        p = refs[1:-1]
        h = x_ref[...]                                    # (rows_tile, 128) f32
        for li in range(n_layers):
            w = p[2 * li][...]                            # (G*in, G*out) block-diag
            b = p[2 * li + 1][...]                        # (1, G*out)
            h = jnp.dot(h, w, preferred_element_type=jnp.float32) + b
            if li < n_layers - 1:                         # ReLU on all but last
                h = jnp.maximum(h, 0.0)
        o_ref[...] = h.astype(o_ref.dtype)
    return kernel


def mlp_forward(x, packed_params, *, block_batch=65536):
    """x: (B, 4) float32 -> (B, 1) float32. packed_params: tuple from pack_params."""
    batch, in_f = x.shape
    assert in_f == DIMS[0]
    out_f = DIMS[-1]
    n_layers = len(DIMS) - 1

    # Pad batch to a multiple of GROUPS (=32) so the lane-dense view is exact.
    # For typical batch sizes this is a no-op (no copy).
    bp = pl.cdiv(batch, GROUPS) * GROUPS
    if bp != batch:
        x = jnp.pad(x, ((0, bp - batch), (0, 0)))
    rows = bp // GROUPS
    xr = x.reshape(rows, LANES)              # contiguous reshape: free

    # Row-tile size: ~1 MiB+ of HBM traffic per grid step, multiple of 8 sublanes.
    block_rows = max(8, (block_batch // GROUPS) // 8 * 8)
    if block_rows >= rows:
        block_rows = rows
        # Whole batch fits in one tile: if big enough, split in two so v7x
        # megacore can run one tile per TensorCore.
        if rows >= 16:
            block_rows = min(rows, ((rows + 1) // 2 + 7) // 8 * 8)
    n_steps = pl.cdiv(rows, block_rows)

    out_cols = GROUPS * out_f                # 32
    param_specs = [pl.BlockSpec(p.shape, lambda i: (0, 0)) for p in packed_params]

    out = pl.pallas_call(
        make_mlp_kernel(n_layers),
        out_shape=jax.ShapeDtypeStruct((rows, out_cols), jnp.float32),
        grid=(n_steps,),
        in_specs=[pl.BlockSpec((block_rows, LANES), lambda i: (i, 0))] + param_specs,
        out_specs=pl.BlockSpec((block_rows, out_cols), lambda i: (i, 0)),
        compiler_params=pltpu.CompilerParams(
            dimension_semantics=("parallel",),           # megacore on v7x
            vmem_limit_bytes=32 * 1024 * 1024),          # covers v5e's 16 MiB default
    )(xr, *packed_params)

    # (rows, 32) -> (bp, 1) is a contiguous reshape (free); slice drops padding.
    return out.reshape(bp, out_f)[:batch]


mlp_forward_jit = jax.jit(mlp_forward, static_argnames=("block_batch",))


# --------------------------- init / packing -------------------------------

def xavier_uniform(key, fan_in, fan_out):
    # torch.nn.init.xavier_uniform_ on an (out, in) weight.
    bound = math.sqrt(6.0 / (fan_in + fan_out))
    return jax.random.uniform(key, (fan_out, fan_in), jnp.float32, -bound, bound)


def linear_bias(key, fan_in, fan_out):
    # torch.nn.Linear default bias init: U(-1/sqrt(fan_in), 1/sqrt(fan_in)).
    bound = 1.0 / math.sqrt(fan_in)
    return jax.random.uniform(key, (fan_out,), jnp.float32, -bound, bound)


def init_params(key):
    params = []
    for fan_in, fan_out in zip(DIMS[:-1], DIMS[1:]):
        key, kw, kb = jax.random.split(key, 3)
        params.append((xavier_uniform(kw, fan_in, fan_out),
                       linear_bias(kb, fan_in, fan_out)))
    return params


def pack_params(params):
    """Block-diagonal packing: weight (out,in) -> kron(I_G, W.T); bias tiled G times."""
    eye = jnp.eye(GROUPS, dtype=jnp.float32)
    packed = []
    for w, b in params:
        packed.append(jnp.kron(eye, w.T.astype(jnp.float32)))          # (G*in, G*out)
        packed.append(jnp.tile(b.astype(jnp.float32), GROUPS)[None])   # (1, G*out)
    return tuple(packed)


def reference_forward(x, params):
    h = x
    for i, (w, b) in enumerate(params):
        h = jnp.dot(h, w.T, precision=jax.lax.Precision.HIGHEST) + b
        if i < len(params) - 1:
            h = jnp.maximum(h, 0.0)
    return h


# --------------------------------- demo -----------------------------------

if __name__ == "__main__":
    key = jax.random.PRNGKey(0)
    k_x, k_p = jax.random.split(key)

    batch = 300     # small; not a multiple of 32 -> exercises pad + masked boundary
    x = jax.random.normal(k_x, (batch, DIMS[0]), jnp.float32)
    params = init_params(k_p)
    packed = pack_params(params)
    ref = reference_forward(x, params)

    # Small tile so the demo also exercises the multi-step pipelined grid
    # (rows=10, block_rows=8 -> 2 steps, second one partially masked).
    out = jax.block_until_ready(mlp_forward_jit(x, packed, block_batch=256))
    assert out.shape == (batch, 1)
    assert jnp.allclose(out, ref, atol=1e-4, rtol=1e-4), "mismatch vs reference (tiled)"

    # Default large-tile path (single/split block at this small batch).
    out2 = jax.block_until_ready(mlp_forward_jit(x, packed))
    assert jnp.allclose(out2, ref, atol=1e-4, rtol=1e-4), "mismatch vs reference (default)"

    print("KERNEL_OK")
</pallas_src>

<mosaic_0001>
module attributes {stable_mosaic.version = 11 : i64} {
  func.func @kernel(%arg0: i32, %arg1: memref<8x128xf32, #tpu.memory_space<vmem>>, %arg2: memref<128x256xf32, #tpu.memory_space<vmem>>, %arg3: memref<1x256xf32, #tpu.memory_space<vmem>>, %arg4: memref<256x256xf32, #tpu.memory_space<vmem>>, %arg5: memref<1x256xf32, #tpu.memory_space<vmem>>, %arg6: memref<256x128xf32, #tpu.memory_space<vmem>>, %arg7: memref<1x128xf32, #tpu.memory_space<vmem>>, %arg8: memref<128x32xf32, #tpu.memory_space<vmem>>, %arg9: memref<1x32xf32, #tpu.memory_space<vmem>>, %arg10: memref<8x32xf32, #tpu.memory_space<vmem>>) attributes {dimension_semantics = [#tpu.dimension_semantics<parallel>], iteration_bounds = array<i64: 2>, scalar_prefetch = 0 : i64, scratch_operands = 0 : i64, tpu.core_type = #tpu.core_type<tc>, window_params = [{transform_indices = @transform_0, window_bounds = array<i64: 8, 128>}, {pipeline_mode = #tpu.pipeline_mode<synchronous>, transform_indices = @transform_1, window_bounds = array<i64: 128, 256>}, {pipeline_mode = #tpu.pipeline_mode<synchronous>, transform_indices = @transform_2, window_bounds = array<i64: 1, 256>}, {pipeline_mode = #tpu.pipeline_mode<synchronous>, transform_indices = @transform_3, window_bounds = array<i64: 256, 256>}, {pipeline_mode = #tpu.pipeline_mode<synchronous>, transform_indices = @transform_4, window_bounds = array<i64: 1, 256>}, {pipeline_mode = #tpu.pipeline_mode<synchronous>, transform_indices = @transform_5, window_bounds = array<i64: 256, 128>}, {pipeline_mode = #tpu.pipeline_mode<synchronous>, transform_indices = @transform_6, window_bounds = array<i64: 1, 128>}, {pipeline_mode = #tpu.pipeline_mode<synchronous>, transform_indices = @transform_7, window_bounds = array<i64: 128, 32>}, {pipeline_mode = #tpu.pipeline_mode<synchronous>, transform_indices = @transform_8, window_bounds = array<i64: 1, 32>}, {transform_indices = @transform_9, window_bounds = array<i64: 8, 32>}]} {
    %c0 = arith.constant 0 : index
    %c0_0 = arith.constant 0 : index
    %0 = vector.load %arg1[%c0, %c0_0] : memref<8x128xf32, #tpu.memory_space<vmem>>, vector<8x128xf32>
    %c0_1 = arith.constant 0 : index
    %c0_2 = arith.constant 0 : index
    %1 = vector.load %arg2[%c0_1, %c0_2] : memref<128x256xf32, #tpu.memory_space<vmem>>, vector<128x256xf32>
    %c0_3 = arith.constant 0 : index
    %c0_4 = arith.constant 0 : index
    %2 = vector.load %arg3[%c0_3, %c0_4] : memref<1x256xf32, #tpu.memory_space<vmem>>, vector<1x256xf32>
    %cst = arith.constant dense<0.000000e+00> : vector<8x256xf32>
    %3 = tpu.matmul %0, %1, %cst {dimension_numbers = #tpu.dot_dimension_numbers<[1], [0], [0], [1], [0, 0, 1, 1], [], []>} : vector<8x128xf32>, vector<128x256xf32>, vector<8x256xf32> -> vector<8x256xf32>
    %4 = vector.broadcast %2 : vector<1x256xf32> to vector<8x256xf32>
    %5 = arith.addf %3, %4 : vector<8x256xf32>
    %cst_5 = arith.constant 0.000000e+00 : f32
    %6 = vector.broadcast %cst_5 : f32 to vector<8x256xf32>
    %7 = arith.maximumf %5, %6 : vector<8x256xf32>
    %c0_6 = arith.constant 0 : index
    %c0_7 = arith.constant 0 : index
    %8 = vector.load %arg4[%c0_6, %c0_7] : memref<256x256xf32, #tpu.memory_space<vmem>>, vector<256x256xf32>
    %c0_8 = arith.constant 0 : index
    %c0_9 = arith.constant 0 : index
    %9 = vector.load %arg5[%c0_8, %c0_9] : memref<1x256xf32, #tpu.memory_space<vmem>>, vector<1x256xf32>
    %cst_10 = arith.constant dense<0.000000e+00> : vector<8x256xf32>
    %10 = tpu.matmul %7, %8, %cst_10 {dimension_numbers = #tpu.dot_dimension_numbers<[1], [0], [0], [1], [0, 0, 1, 1], [], []>} : vector<8x256xf32>, vector<256x256xf32>, vector<8x256xf32> -> vector<8x256xf32>
    %11 = vector.broadcast %9 : vector<1x256xf32> to vector<8x256xf32>
    %12 = arith.addf %10, %11 : vector<8x256xf32>
    %cst_11 = arith.constant 0.000000e+00 : f32
    %13 = vector.broadcast %cst_11 : f32 to vector<8x256xf32>
    %14 = arith.maximumf %12, %13 : vector<8x256xf32>
    %c0_12 = arith.constant 0 : index
    %c0_13 = arith.constant 0 : index
    %15 = vector.load %arg6[%c0_12, %c0_13] : memref<256x128xf32, #tpu.memory_space<vmem>>, vector<256x128xf32>
    %c0_14 = arith.constant 0 : index
    %c0_15 = arith.constant 0 : index
    %16 = vector.load %arg7[%c0_14, %c0_15] : memref<1x128xf32, #tpu.memory_space<vmem>>, vector<1x128xf32>
    %cst_16 = arith.constant dense<0.000000e+00> : vector<8x128xf32>
    %17 = tpu.matmul %14, %15, %cst_16 {dimension_numbers = #tpu.dot_dimension_numbers<[1], [0], [0], [1], [0, 0, 1, 1], [], []>} : vector<8x256xf32>, vector<256x128xf32>, vector<8x128xf32> -> vector<8x128xf32>
    %18 = vector.broadcast %16 : vector<1x128xf32> to vector<8x128xf32>
    %19 = arith.addf %17, %18 : vector<8x128xf32>
    %cst_17 = arith.constant 0.000000e+00 : f32
    %20 = vector.broadcast %cst_17 : f32 to vector<8x128xf32>
    %21 = arith.maximumf %19, %20 : vector<8x128xf32>
    %c0_18 = arith.constant 0 : index
    %c0_19 = arith.constant 0 : index
    %22 = vector.load %arg8[%c0_18, %c0_19] : memref<128x32xf32, #tpu.memory_space<vmem>>, vector<128x32xf32>
    %c0_20 = arith.constant 0 : index
    %c0_21 = arith.constant 0 : index
    %23 = vector.load %arg9[%c0_20, %c0_21] : memref<1x32xf32, #tpu.memory_space<vmem>>, vector<1x32xf32>
    %cst_22 = arith.constant dense<0.000000e+00> : vector<8x32xf32>
    %24 = tpu.matmul %21, %22, %cst_22 {dimension_numbers = #tpu.dot_dimension_numbers<[1], [0], [0], [1], [0, 0, 1, 1], [], []>} : vector<8x128xf32>, vector<128x32xf32>, vector<8x32xf32> -> vector<8x32xf32>
    %25 = vector.broadcast %23 : vector<1x32xf32> to vector<8x32xf32>
    %26 = arith.addf %24, %25 : vector<8x32xf32>
    %c0_23 = arith.constant 0 : index
    %c0_24 = arith.constant 0 : index
    %27 = vector.load %arg10[%c0_23, %c0_24] : memref<8x32xf32, #tpu.memory_space<vmem>>, vector<8x32xf32>
    tpu.vector_store %arg10[%c0_23, %c0_24], %26 {strides = array<i32>} : memref<8x32xf32, #tpu.memory_space<vmem>>, vector<8x32xf32>,
    return
  }
  func.func @transform_0(%arg0: i32) -> (i32, i32) {
    %c0_i32 = arith.constant 0 : i32
    %c0_i32_0 = arith.constant 0 : i32
    return %arg0, %c0_i32 : i32, i32
  }
  func.func @transform_1(%arg0: i32) -> (i32, i32) {
    %c0_i32 = arith.constant 0 : i32
    %c0_i32_0 = arith.constant 0 : i32
    %c0_i32_1 = arith.constant 0 : i32
    return %c0_i32, %c0_i32_0 : i32, i32
  }
  func.func @transform_2(%arg0: i32) -> (i32, i32) {
    %c0_i32 = arith.constant 0 : i32
    %c0_i32_0 = arith.constant 0 : i32
    %c0_i32_1 = arith.constant 0 : i32
    return %c0_i32, %c0_i32_0 : i32, i32
  }
  func.func @transform_3(%arg0: i32) -> (i32, i32) {
    %c0_i32 = arith.constant 0 : i32
    %c0_i32_0 = arith.constant 0 : i32
    %c0_i32_1 = arith.constant 0 : i32
    return %c0_i32, %c0_i32_0 : i32, i32
  }
  func.func @transform_4(%arg0: i32) -> (i32, i32) {
    %c0_i32 = arith.constant 0 : i32
    %c0_i32_0 = arith.constant 0 : i32
    %c0_i32_1 = arith.constant 0 : i32
    return %c0_i32, %c0_i32_0 : i32, i32
  }
  func.func @transform_5(%arg0: i32) -> (i32, i32) {
    %c0_i32 = arith.constant 0 : i32
    %c0_i32_0 = arith.constant 0 : i32
    %c0_i32_1 = arith.constant 0 : i32
    return %c0_i32, %c0_i32_0 : i32, i32
  }
  func.func @transform_6(%arg0: i32) -> (i32, i32) {
    %c0_i32 = arith.constant 0 : i32
    %c0_i32_0 = arith.constant 0 : i32
    %c0_i32_1 = arith.constant 0 : i32
    return %c0_i32, %c0_i32_0 : i32, i32
  }
  func.func @transform_7(%arg0: i32) -> (i32, i32) {
    %c0_i32 = arith.constant 0 : i32
    %c0_i32_0 = arith.constant 0 : i32
    %c0_i32_1 = arith.constant 0 : i32
    return %c0_i32, %c0_i32_0 : i32, i32
  }
  func.func @transform_8(%arg0: i32) -> (i32, i32) {
    %c0_i32 = arith.constant 0 : i32
    %c0_i32_0 = arith.constant 0 : i32
    %c0_i32_1 = arith.constant 0 : i32
    return %c0_i32, %c0_i32_0 : i32, i32
  }
  func.func @transform_9(%arg0: i32) -> (i32, i32) {
    %c0_i32 = arith.constant 0 : i32
    %c0_i32_0 = arith.constant 0 : i32
    return %arg0, %c0_i32 : i32, i32
  }
}

</mosaic_0001>

<llo_original>
// kernel: mlp_forward.1
$region0: #{mlp_forward.1}
  #allocation0 [shape = 'u32[]', space=smem, size = 0x4, offset = 0x4, fixed_abs, tag = 'smem constant byte address 0x4 - core index']
  #allocation1 [shape = 'u32[144,128]{1,0:T(1,128)}', space=vmem, size = 0x12000, scoped, tag = 'internal scratch']
  %s0 = inlined_call_operand.vmem [shape: f32[10,128], index: 0, kind: input, shape index: {}]
  %s1 = inlined_call_operand.vmem [shape: f32[128,256], index: 1, kind: input, shape index: {}]
  %s2 = inlined_call_operand.vmem [shape: f32[1,256], index: 2, kind: input, shape index: {}]
  %s3 = inlined_call_operand.vmem [shape: f32[256,256], index: 3, kind: input, shape index: {}]
  %s4 = inlined_call_operand.vmem [shape: f32[1,256], index: 4, kind: input, shape index: {}]
  %s5 = inlined_call_operand.vmem [shape: f32[256,128], index: 5, kind: input, shape index: {}]
  %s6 = inlined_call_operand.vmem [shape: f32[1,128], index: 6, kind: input, shape index: {}]
  %s7 = inlined_call_operand.vmem [shape: f32[128,32], index: 7, kind: input, shape index: {}]
  %s8 = inlined_call_operand.vmem [shape: f32[1,32], index: 8, kind: input, shape index: {}]
  %s9 = inlined_call_operand.vmem [shape: f32[10,32], index: 9, kind: output, shape index: {}]
  %s10 = sld [smem:[#allocation0]]
  $region69: #{mlp_forward.1} parent=0
    _
  %s12 = ssub.s32 1, %s10
  %s13 = scalar_select 0, %s12, %s10
  loop: start=0, step=1, limit=4
  $region2: #{mlp_forward.1} parent=0 // loop_pre_header
    _
  $region3: #{mlp_forward.1} parent=0 // loop_header
    %s15 = sphi 0, %s19
    %p16 = scmp.ge.s32.totalorder %s15, 4
    %s25 = sphi 0, %s27
    %s28 = sphi 0, %s25
    %s29 = sphi 0, %s28
    %s45 = sphi 0, %s29
    %s49 = sphi 0, %s49
    %s51 = sphi 0, %s49
    %s52 = sphi 0, %s51
    %s66 = sphi 0, %s52
    %s70 = sphi 0, %s70
    %s72 = sphi 0, %s70
    %s73 = sphi 0, %s72
    %s87 = sphi 0, %s73
    %s91 = sphi 0, %s91
    %s93 = sphi 0, %s91
    %s94 = sphi 0, %s93
    %s108 = sphi 0, %s94
    %s112 = sphi 0, %s112
    %s114 = sphi 0, %s112
    %s115 = sphi 0, %s114
    %s129 = sphi 0, %s115
    %s133 = sphi 0, %s133
    %s135 = sphi 0, %s133
    %s136 = sphi 0, %s135
    %s150 = sphi 0, %s136
    %s154 = sphi 0, %s154
    %s156 = sphi 0, %s154
    %s157 = sphi 0, %s156
    %s171 = sphi 0, %s157
    %s175 = sphi 0, %s175
    %s177 = sphi 0, %s175
    %s178 = sphi 0, %s177
    %s192 = sphi 0, %s178
    %s196 = sphi 0, %s196
    %s198 = sphi 0, %s196
    %s199 = sphi 0, %s198
    %s213 = sphi 0, %s199
    %s219 = sphi 0, %s221
    %s222 = sphi 0, %s219
    %s223 = sphi 0, %s222
    %s239 = sphi 0, %s223
  $region4: #{mlp_forward.1} parent=0 // loop_header_branch
    %18 = sbr.rel (%p16) target = $region8
  $region5: #{mlp_forward.1} parent=0 // loop_body
    %s20 = ssub.s32 %s15, 1
    %s21 = ssub.s32 %s15, 2
    %s22 = sadd.s32 %s15, 1
    %s23 = ssub.s32 %s15, %s22
    %p24 = scmp.eq.s32.totalorder %s23, 0
    %s26 = sadd.s32 %s25, 1
    %s27 = scalar_select %p24, %s25, %s26
    %p30 = pneg %p24
    %p31 = scmp.eq.s32.totalorder %s15, 1
    %p32 = por %p30, %p31
    %p33 = scmp.ne.s32.totalorder %s25, %s28
    %p34 = scmp.eq.s32.totalorder %s15, 0
    %p35 = por %p33, %p34
    %p36 = scmp.ne.s32.totalorder %s25, %s28
    %p37 = scmp.eq.s32.totalorder %s20, 1
    %p38 = por %p36, %p37
    %p39 = scmp.ne.s32.totalorder %s28, %s29
    %p40 = scmp.eq.s32.totalorder %s20, 0
    %p41 = por %p39, %p40
    %p42 = scmp.ne.s32.totalorder %s28, %s29
    %p43 = scmp.eq.s32.totalorder %s21, 1
    %p44 = por %p42, %p43
    %p46 = scmp.ne.s32.totalorder %s29, %s45
    %p47 = scmp.eq.s32.totalorder %s21, 0
    %p48 = por %p46, %p47
    %s50 = sadd.s32 %s49, 1
    %p53 = scmp.eq.s32.totalorder %s15, 1
    %p54 = scmp.ne.s32.totalorder %s49, %s51
    %p55 = scmp.eq.s32.totalorder %s15, 0
    %p56 = por %p54, %p55
    %p57 = scmp.ne.s32.totalorder %s49, %s51
    %p58 = scmp.eq.s32.totalorder %s20, 1
    %p59 = por %p57, %p58
    %p60 = scmp.ne.s32.totalorder %s51, %s52
    %p61 = scmp.eq.s32.totalorder %s20, 0
    %p62 = por %p60, %p61
    %p63 = scmp.ne.s32.totalorder %s51, %s52
    %p64 = scmp.eq.s32.totalorder %s21, 1
    %p65 = por %p63, %p64
    %p67 = scmp.ne.s32.totalorder %s52, %s66
    %p68 = scmp.eq.s32.totalorder %s21, 0
    %p69 = por %p67, %p68
    %s71 = sadd.s32 %s70, 1
    %p74 = scmp.eq.s32.totalorder %s15, 1
    %p75 = scmp.ne.s32.totalorder %s70, %s72
    %p76 = scmp.eq.s32.totalorder %s15, 0
    %p77 = por %p75, %p76
    %p78 = scmp.ne.s32.totalorder %s70, %s72
    %p79 = scmp.eq.s32.totalorder %s20, 1
    %p80 = por %p78, %p79
    %p81 = scmp.ne.s32.totalorder %s72, %s73
    %p82 = scmp.eq.s32.totalorder %s20, 0
    %p83 = por %p81, %p82
    %p84 = scmp.ne.s32.totalorder %s72, %s73
    %p85 = scmp.eq.s32.totalorder %s21, 1
    %p86 = por %p84, %p85
    %p88 = scmp.ne.s32.totalorder %s73, %s87
    %p89 = scmp.eq.s32.totalorder %s21, 0
    %p90 = por %p88, %p89
    %s92 = sadd.s32 %s91, 1
    %p95 = scmp.eq.s32.totalorder %s15, 1
    %p96 = scmp.ne.s32.totalorder %s91, %s93
    %p97 = scmp.eq.s32.totalorder %s15, 0
    %p98 = por %p96, %p97
    %p99 = scmp.ne.s32.totalorder %s91, %s93
    %p100 = scmp.eq.s32.totalorder %s20, 1
    %p101 = por %p99, %p100
    %p102 = scmp.ne.s32.totalorder %s93, %s94
    %p103 = scmp.eq.s32.totalorder %s20, 0
    %p104 = por %p102, %p103
    %p105 = scmp.ne.s32.totalorder %s93, %s94
    %p106 = scmp.eq.s32.totalorder %s21, 1
    %p107 = por %p105, %p106
    %p109 = scmp.ne.s32.totalorder %s94, %s108
    %p110 = scmp.eq.s32.totalorder %s21, 0
    %p111 = por %p109, %p110
    %s113 = sadd.s32 %s112, 1
    %p116 = scmp.eq.s32.totalorder %s15, 1
    %p117 = scmp.ne.s32.totalorder %s112, %s114
    %p118 = scmp.eq.s32.totalorder %s15, 0
    %p119 = por %p117, %p118
    %p120 = scmp.ne.s32.totalorder %s112, %s114
    %p121 = scmp.eq.s32.totalorder %s20, 1
    %p122 = por %p120, %p121
    %p123 = scmp.ne.s32.totalorder %s114, %s115
    %p124 = scmp.eq.s32.totalorder %s20, 0
    %p125 = por %p123, %p124
    %p126 = scmp.ne.s32.totalorder %s114, %s115
    %p127 = scmp.eq.s32.totalorder %s21, 1
    %p128 = por %p126, %p127
    %p130 = scmp.ne.s32.totalorder %s115, %s129
    %p131 = scmp.eq.s32.totalorder %s21, 0
    %p132 = por %p130, %p131
    %s134 = sadd.s32 %s133, 1
    %p137 = scmp.eq.s32.totalorder %s15, 1
    %p138 = scmp.ne.s32.totalorder %s133, %s135
    %p139 = scmp.eq.s32.totalorder %s15, 0
    %p140 = por %p138, %p139
    %p141 = scmp.ne.s32.totalorder %s133, %s135
    %p142 = scmp.eq.s32.totalorder %s20, 1
    %p143 = por %p141, %p142
    %p144 = scmp.ne.s32.totalorder %s135, %s136
    %p145 = scmp.eq.s32.totalorder %s20, 0
    %p146 = por %p144, %p145
    %p147 = scmp.ne.s32.totalorder %s135, %s136
    %p148 = scmp.eq.s32.totalorder %s21, 1
    %p149 = por %p147, %p148
    %p151 = scmp.ne.s32.totalorder %s136, %s150
    %p152 = scmp.eq.s32.totalorder %s21, 0
    %p153 = por %p151, %p152
    %s155 = sadd.s32 %s154, 1
    %p158 = scmp.eq.s32.totalorder %s15, 1
    %p159 = scmp.ne.s32.totalorder %s154, %s156
    %p160 = scmp.eq.s32.totalorder %s15, 0
    %p161 = por %p159, %p160
    %p162 = scmp.ne.s32.totalorder %s154, %s156
    %p163 = scmp.eq.s32.totalorder %s20, 1
    %p164 = por %p162, %p163
    %p165 = scmp.ne.s32.totalorder %s156, %s157
    %p166 = scmp.eq.s32.totalorder %s20, 0
    %p167 = por %p165, %p166
    %p168 = scmp.ne.s32.totalorder %s156, %s157
    %p169 = scmp.eq.s32.totalorder %s21, 1
    %p170 = por %p168, %p169
    %p172 = scmp.ne.s32.totalorder %s157, %s171
    %p173 = scmp.eq.s32.totalorder %s21, 0
    %p174 = por %p172, %p173
    %s176 = sadd.s32 %s175, 1
    %p179 = scmp.eq.s32.totalorder %s15, 1
    %p180 = scmp.ne.s32.totalorder %s175, %s177
    %p181 = scmp.eq.s32.totalorder %s15, 0
    %p182 = por %p180, %p181
    %p183 = scmp.ne.s32.totalorder %s175, %s177
    %p184 = scmp.eq.s32.totalorder %s20, 1
    %p185 = por %p183, %p184
    %p186 = scmp.ne.s32.totalorder %s177, %s178
    %p187 = scmp.eq.s32.totalorder %s20, 0
    %p188 = por %p186, %p187
    %p189 = scmp.ne.s32.totalorder %s177, %s178
    %p190 = scmp.eq.s32.totalorder %s21, 1
    %p191 = por %p189, %p190
    %p193 = scmp.ne.s32.totalorder %s178, %s192
    %p194 = scmp.eq.s32.totalorder %s21, 0
    %p195 = por %p193, %p194
    %s197 = sadd.s32 %s196, 1
    %p200 = scmp.eq.s32.totalorder %s15, 1
    %p201 = scmp.ne.s32.totalorder %s196, %s198
    %p202 = scmp.eq.s32.totalorder %s15, 0
    %p203 = por %p201, %p202
    %p204 = scmp.ne.s32.totalorder %s196, %s198
    %p205 = scmp.eq.s32.totalorder %s20, 1
    %p206 = por %p204, %p205
    %p207 = scmp.ne.s32.totalorder %s198, %s199
    %p208 = scmp.eq.s32.totalorder %s20, 0
    %p209 = por %p207, %p208
    %p210 = scmp.ne.s32.totalorder %s198, %s199
    %p211 = scmp.eq.s32.totalorder %s21, 1
    %p212 = por %p210, %p211
    %p214 = scmp.ne.s32.totalorder %s199, %s213
    %p215 = scmp.eq.s32.totalorder %s21, 0
    %p216 = por %p214, %p215
    %s217 = ssub.s32 %s15, %s22
    %p218 = scmp.eq.s32.totalorder %s217, 0
    %s220 = sadd.s32 %s219, 1
    %s221 = scalar_select %p218, %s219, %s220
    %p224 = pneg %p218
    %p225 = scmp.eq.s32.totalorder %s15, 1
    %p226 = por %p224, %p225
    %p227 = scmp.ne.s32.totalorder %s219, %s222
    %p228 = scmp.eq.s32.totalorder %s15, 0
    %p229 = por %p227, %p228
    %p230 = scmp.ne.s32.totalorder %s219, %s222
    %p231 = scmp.eq.s32.totalorder %s20, 1
    %p232 = por %p230, %p231
    %p233 = scmp.ne.s32.totalorder %s222, %s223
    %p234 = scmp.eq.s32.totalorder %s20, 0
    %p235 = por %p233, %p234
    %p236 = scmp.ne.s32.totalorder %s222, %s223
    %p237 = scmp.eq.s32.totalorder %s21, 1
    %p238 = por %p236, %p237
    %p240 = scmp.ne.s32.totalorder %s223, %s239
    %p241 = scmp.eq.s32.totalorder %s21, 0
    %p242 = por %p240, %p241
    %p243 = scmp.le.s32.totalorder 1, %s15
    %p244 = scmp.lt.s32.totalorder %s15, 3
    %p245 = pnand %p243, %p244
    %p246 = pneg %p245
    // Predicated region
    $region9: #{mlp_forward.1} parent=5 // pred_check
      _
    $region10: #{mlp_forward.1} parent=5 // pred_check_branch
      %248 = sbr.rel (%p245) target = $region12
    $region11: #{mlp_forward.1} parent=5 // pred_region
      %s249 = ssub.s32 %s15, 1
      // Predicated region
      $region13: #{mlp_forward.1} parent=11 // pred_check
        %p250 = pneg %p62
      $region14: #{mlp_forward.1} parent=11 // pred_check_branch
        %252 = sbr.rel (%p250) target = $region16
      $region15: #{mlp_forward.1} parent=11 // pred_region
        _
      $region16: #{mlp_forward.1} parent=11 // pred_fallthru
        _
      // Predicated region
      $region17: #{mlp_forward.1} parent=11 // pred_check
        %p253 = pneg %p83
      $region18: #{mlp_forward.1} parent=11 // pred_check_branch
        %255 = sbr.rel (%p253) target = $region20
      $region19: #{mlp_forward.1} parent=11 // pred_region
        _
      $region20: #{mlp_forward.1} parent=11 // pred_fallthru
        _
      // Predicated region
      $region21: #{mlp_forward.1} parent=11 // pred_check
        %p256 = pneg %p104
      $region22: #{mlp_forward.1} parent=11 // pred_check_branch
        %258 = sbr.rel (%p256) target = $region24
      $region23: #{mlp_forward.1} parent=11 // pred_region
        _
      $region24: #{mlp_forward.1} parent=11 // pred_fallthru
        _
      // Predicated region
      $region25: #{mlp_forward.1} parent=11 // pred_check
        %p259 = pneg %p125
      $region26: #{mlp_forward.1} parent=11 // pred_check_branch
        %261 = sbr.rel (%p259) target = $region28
      $region27: #{mlp_forward.1} parent=11 // pred_region
        _
      $region28: #{mlp_forward.1} parent=11 // pred_fallthru
        _
      // Predicated region
      $region29: #{mlp_forward.1} parent=11 // pred_check
        %p262 = pneg %p146
      $region30: #{mlp_forward.1} parent=11 // pred_check_branch
        %264 = sbr.rel (%p262) target = $region32
      $region31: #{mlp_forward.1} parent=11 // pred_region
        _
      $region32: #{mlp_forward.1} parent=11 // pred_fallthru
        _
      // Predicated region
      $region33: #{mlp_forward.1} parent=11 // pred_check
        %p265 = pneg %p167
      $region34: #{mlp_forward.1} parent=11 // pred_check_branch
        %267 = sbr.rel (%p265) target = $region36
      $region35: #{mlp_forward.1} parent=11 // pred_region
        _
      $region36: #{mlp_forward.1} parent=11 // pred_fallthru
        _
      // Predicated region
      $region37: #{mlp_forward.1} parent=11 // pred_check
        %p268 = pneg %p188
      $region38: #{mlp_forward.1} parent=11 // pred_check_branch
        %270 = sbr.rel (%p268) target = $region40
      $region39: #{mlp_forward.1} parent=11 // pred_region
        _
      $region40: #{mlp_forward.1} parent=11 // pred_fallthru
        _
      // Predicated region
      $region41: #{mlp_forward.1} parent=11 // pred_check
        %p271 = pneg %p209
      $region42: #{mlp_forward.1} parent=11 // pred_check_branch
        %273 = sbr.rel (%p271) target = $region44
      $region43: #{mlp_forward.1} parent=11 // pred_region
        _
      $region44: #{mlp_forward.1} parent=11 // pred_fallthru
        _
    $region12: #{mlp_forward.1} parent=5 // pred_fallthru
      _
    %p274 = scmp.lt.s32.totalorder %s15, 2
    // Predicated region
    $region45: #{mlp_forward.1} parent=5 // pred_check
      %p275 = pneg %p274
    $region46: #{mlp_forward.1} parent=5 // pred_check_branch
      %277 = sbr.rel (%p275) target = $region48
    $region47: #{mlp_forward.1} parent=5 // pred_region
      // Predicated region
      $region49: #{mlp_forward.1} parent=47 // pred_check
        %p278 = pneg %p35
      $region50: #{mlp_forward.1} parent=47 // pred_check_branch
        %280 = sbr.rel (%p278) target = $region52
      $region51: #{mlp_forward.1} parent=47 // pred_region
        %p281 = scmp.lt.s32.totalorder %s15, 1
        %s282 = scalar_select %p281, %s15, 1
        %s283 = smul.addr %s282, 8
        %s284 = scalar_lea.vmem %s0, %s283
      $region52: #{mlp_forward.1} parent=47 // pred_fallthru
        _
    $region48: #{mlp_forward.1} parent=5 // pred_fallthru
      _
    %p285 = scmp.le.s32.totalorder 1, %s15
    %p286 = scmp.lt.s32.totalorder %s15, 3
    %p287 = pnand %p285, %p286
    %p288 = pneg %p287
    // Predicated region
    $region53: #{mlp_forward.1} parent=5 // pred_check
      _
    $region54: #{mlp_forward.1} parent=5 // pred_check_branch
      %290 = sbr.rel (%p287) target = $region56
    $region55: #{mlp_forward.1} parent=5 // pred_region
      %s291 = ssub.s32 %s15, 1
      %p292 = scmp.lt.s32.totalorder %s20, 1
      %s293 = scalar_select %p292, %s20, 1
      %s294 = smul.addr %s293, 8
      %s295 = scalar_lea.vmem %s0, %s294
      %p296 = pneg %p41
      %p297 = pneg %p38
      %p298 = pneg %p62
      %p299 = pneg %p59
      %p300 = pneg %p83
      %p301 = pneg %p80
      %p302 = pneg %p104
      %p303 = pneg %p101
      %p304 = pneg %p125
      %p305 = pneg %p122
      %p306 = pneg %p146
      %p307 = pneg %p143
      %p308 = pneg %p167
      %p309 = pneg %p164
      %p310 = pneg %p188
      %p311 = pneg %p185
      %p312 = pneg %p209
      %p313 = pneg %p206
      %p314 = pneg %p235
      %p315 = pneg %p232
      %p316 = scmp.lt.s32.totalorder %s20, 1
      %s317 = scalar_select %p316, %s20, 1
      %s318 = smul.addr %s317, 8
      %s319 = scalar_lea.vmem %s9, %s318
      %p320 = scmp.lt.s32.totalorder %s20, 1
      %s321 = scalar_select %p320, %s20, 1
      %s322 = smul.addr %s321, 8
      %s323 = scalar_lea.vmem %s0, %s322
      %p324 = scmp.lt.s32.totalorder %s20, 1
      %s325 = scalar_select %p324, %s20, 1
      %s326 = smul.addr %s325, 8
      %s327 = scalar_lea.vmem %s9, %s326
      %v328 = vld [vmem:[%s323] sm:$0xff]
      %v329 = vld [vmem:[%s1] sm:$0xff]
      %v330 = vld [vmem:[%s1 + $0x8] sm:$0xff]
      %v331 = vld [vmem:[%s1 + $0x10] sm:$0xff]
      %v332 = vld [vmem:[%s1 + $0x18] sm:$0xff]
      %v333 = vld [vmem:[%s1 + $0x20] sm:$0xff]
      %v334 = vld [vmem:[%s1 + $0x28] sm:$0xff]
      %v335 = vld [vmem:[%s1 + $0x30] sm:$0xff]
      %v336 = vld [vmem:[%s1 + $0x38] sm:$0xff]
      %v337 = vld [vmem:[%s1 + $0x40] sm:$0xff]
      %v338 = vld [vmem:[%s1 + $0x48] sm:$0xff]
      %v339 = vld [vmem:[%s1 + $0x50] sm:$0xff]
      %v340 = vld [vmem:[%s1 + $0x58] sm:$0xff]
      %v341 = vld [vmem:[%s1 + $0x60] sm:$0xff]
      %v342 = vld [vmem:[%s1 + $0x68] sm:$0xff]
      %v343 = vld [vmem:[%s1 + $0x70] sm:$0xff]
      %v344 = vld [vmem:[%s1 + $0x78] sm:$0xff]
      %v345 = vld [vmem:[%s1 + $0x80] sm:$0xff]
      %v346 = vld [vmem:[%s1 + $0x88] sm:$0xff]
      %v347 = vld [vmem:[%s1 + $0x90] sm:$0xff]
      %v348 = vld [vmem:[%s1 + $0x98] sm:$0xff]
      %v349 = vld [vmem:[%s1 + $0xa0] sm:$0xff]
      %v350 = vld [vmem:[%s1 + $0xa8] sm:$0xff]
      %v351 = vld [vmem:[%s1 + $0xb0] sm:$0xff]
      %v352 = vld [vmem:[%s1 + $0xb8] sm:$0xff]
      %v353 = vld [vmem:[%s1 + $0xc0] sm:$0xff]
      %v354 = vld [vmem:[%s1 + $0xc8] sm:$0xff]
      %v355 = vld [vmem:[%s1 + $0xd0] sm:$0xff]
      %v356 = vld [vmem:[%s1 + $0xd8] sm:$0xff]
      %v357 = vld [vmem:[%s1 + $0xe0] sm:$0xff]
      %v358 = vld [vmem:[%s1 + $0xe8] sm:$0xff]
      %v359 = vld [vmem:[%s1 + $0xf0] sm:$0xff]
      %v360 = vld [vmem:[%s1 + $0xf8] sm:$0xff]
      %v361 = vld [vmem:[%s2] sm:$0x3]
      %v363 = vlaneseq
      %v364 = vshrl.u32 %v363, 7
      %v365 = vsub.s32 0, %v364
      %v366 = vrot.slane %v361, %v365
      %v367 = vlaneseq
      %v368 = vshrl.u32 %v367, 7
      %v369 = vsub.s32 1, %v368
      %v370 = vrot.slane %v361, %v369
      %373 = vmatprep.subr.mxu0 %v330
      %374 = vmatpush1.msra.mxu0 %v329
      %375 = vmatprep.subr.mxu0 %v332
      %376 = vmatpush1.msra.mxu0 %v331
      %377 = vmatprep.subr.mxu0 %v334
      %378 = vmatpush1.msra.mxu0 %v333
      %379 = vmatprep.subr.mxu0 %v336
      %380 = vmatpush1.msra.mxu0 %v335
      %381 = vmatprep.subr.mxu0 %v338
      %382 = vmatpush1.msra.mxu0 %v337
      %383 = vmatprep.subr.mxu0 %v340
      %384 = vmatpush1.msra.mxu0 %v339
      %385 = vmatprep.subr.mxu0 %v342
      %386 = vmatpush1.msra.mxu0 %v341
      %387 = vmatprep.subr.mxu0 %v344
      %388 = vmatpush1.msra.mxu0 %v343
      %389 = vmatprep.subr.mxu0 %v346
      %390 = vmatpush1.msra.mxu0 %v345
      %391 = vmatprep.subr.mxu0 %v348
      %392 = vmatpush1.msra.mxu0 %v347
      %393 = vmatprep.subr.mxu0 %v350
      %394 = vmatpush1.msra.mxu0 %v349
      %395 = vmatprep.subr.mxu0 %v352
      %396 = vmatpush1.msra.mxu0 %v351
      %397 = vmatprep.subr.mxu0 %v354
      %398 = vmatpush1.msra.mxu0 %v353
      %399 = vmatprep.subr.mxu0 %v356
      %400 = vmatpush1.msra.mxu0 %v355
      %401 = vmatprep.subr.mxu0 %v358
      %402 = vmatpush1.msra.mxu0 %v357
      %403 = vmatprep.subr.mxu0 %v360
      %404 = vmatpush1.msra.mxu0 %v359
      %405 = vmatprep.subr.mxu0 0.0
      %406 = vmatpush1.msra.mxu0 0.0
      %407 = vmatprep.subr.mxu0 0.0
      %408 = vmatpush1.msra.mxu0 0.0
      %409 = vmatprep.subr.mxu0 0.0
      %410 = vmatpush1.msra.mxu0 0.0
      %411 = vmatprep.subr.mxu0 0.0
      %412 = vmatpush1.msra.mxu0 0.0
      %413 = vmatprep.subr.mxu0 0.0
      %414 = vmatpush1.msra.mxu0 0.0
      %415 = vmatprep.subr.mxu0 0.0
      %416 = vmatpush1.msra.mxu0 0.0
      %417 = vmatprep.subr.mxu0 0.0
      %418 = vmatpush1.msra.mxu0 0.0
      %419 = vmatprep.subr.mxu0 0.0
      %420 = vmatpush1.msra.mxu0 0.0
      %421 = vmatprep.subr.mxu0 0.0
      %422 = vmatpush1.msra.mxu0 0.0
      %423 = vmatprep.subr.mxu0 0.0
      %424 = vmatpush1.msra.mxu0 0.0
      %425 = vmatprep.subr.mxu0 0.0
      %426 = vmatpush1.msra.mxu0 0.0
      %427 = vmatprep.subr.mxu0 0.0
      %428 = vmatpush1.msra.mxu0 0.0
      %429 = vmatprep.subr.mxu0 0.0
      %430 = vmatpush1.msra.mxu0 0.0
      %431 = vmatprep.subr.mxu0 0.0
      %432 = vmatpush1.msra.mxu0 0.0
      %433 = vmatprep.subr.mxu0 0.0
      %434 = vmatpush1.msra.mxu0 0.0
      %435 = vmatprep.subr.mxu0 0.0
      %436 = vmatpush1.msra.mxu0 0.0
      %437 = vmatprep.mubr.f32.mxu0 0.0
      %438 = vmatmul.mubr.f32.gmra.mrb[0].mxu0 %v328
      %v439 = vpop.f32.mrb[0].mxu0
      %v440 = vadd.f32 %v366, %v439
      %v441 = vpop.f32.mrb[0].mxu0
      %v442 = vadd.f32 %v370, %v441
      %443 = vdwg.mxu0
      %v444 = vmax.f32 %v440, 0.0
      %v445 = vmax.f32 %v442, 0.0
      %v446 = vld [vmem:[%s3] sm:$0xff]
      %v447 = vld [vmem:[%s3 + $0x8] sm:$0xff]
      %v448 = vld [vmem:[%s3 + $0x10] sm:$0xff]
      %v449 = vld [vmem:[%s3 + $0x18] sm:$0xff]
      %v450 = vld [vmem:[%s3 + $0x20] sm:$0xff]
      %v451 = vld [vmem:[%s3 + $0x28] sm:$0xff]
      %v452 = vld [vmem:[%s3 + $0x30] sm:$0xff]
      %v453 = vld [vmem:[%s3 + $0x38] sm:$0xff]
      %v454 = vld [vmem:[%s3 + $0x40] sm:$0xff]
      %v455 = vld [vmem:[%s3 + $0x48] sm:$0xff]
      %v456 = vld [vmem:[%s3 + $0x50] sm:$0xff]
      %v457 = vld [vmem:[%s3 + $0x58] sm:$0xff]
      %v458 = vld [vmem:[%s3 + $0x60] sm:$0xff]
      %v459 = vld [vmem:[%s3 + $0x68] sm:$0xff]
      %v460 = vld [vmem:[%s3 + $0x70] sm:$0xff]
      %v461 = vld [vmem:[%s3 + $0x78] sm:$0xff]
      %v462 = vld [vmem:[%s3 + $0x80] sm:$0xff]
      %v463 = vld [vmem:[%s3 + $0x88] sm:$0xff]
      %v464 = vld [vmem:[%s3 + $0x90] sm:$0xff]
      %v465 = vld [vmem:[%s3 + $0x98] sm:$0xff]
      %v466 = vld [vmem:[%s3 + $0xa0] sm:$0xff]
      %v467 = vld [vmem:[%s3 + $0xa8] sm:$0xff]
      %v468 = vld [vmem:[%s3 + $0xb0] sm:$0xff]
      %v469 = vld [vmem:[%s3 + $0xb8] sm:$0xff]
      %v470 = vld [vmem:[%s3 + $0xc0] sm:$0xff]
      %v471 = vld [vmem:[%s3 + $0xc8] sm:$0xff]
      %v472 = vld [vmem:[%s3 + $0xd0] sm:$0xff]
      %v473 = vld [vmem:[%s3 + $0xd8] sm:$0xff]
      %v474 = vld [vmem:[%s3 + $0xe0] sm:$0xff]
      %v475 = vld [vmem:[%s3 + $0xe8] sm:$0xff]
      %v476 = vld [vmem:[%s3 + $0xf0] sm:$0xff]
      %v477 = vld [vmem:[%s3 + $0xf8] sm:$0xff]
      %v478 = vld [vmem:[%s3 + $0x100] sm:$0xff]
      %v479 = vld [vmem:[%s3 + $0x108] sm:$0xff]
      %v480 = vld [vmem:[%s3 + $0x110] sm:$0xff]
      %v481 = vld [vmem:[%s3 + $0x118] sm:$0xff]
      %v482 = vld [vmem:[%s3 + $0x120] sm:$0xff]
      %v483 = vld [vmem:[%s3 + $0x128] sm:$0xff]
      %v484 = vld [vmem:[%s3 + $0x130] sm:$0xff]
      %v485 = vld [vmem:[%s3 + $0x138] sm:$0xff]
      %v486 = vld [vmem:[%s3 + $0x140] sm:$0xff]
      %v487 = vld [vmem:[%s3 + $0x148] sm:$0xff]
      %v488 = vld [vmem:[%s3 + $0x150] sm:$0xff]
      %v489 = vld [vmem:[%s3 + $0x158] sm:$0xff]
      %v490 = vld [vmem:[%s3 + $0x160] sm:$0xff]
      %v491 = vld [vmem:[%s3 + $0x168] sm:$0xff]
      %v492 = vld [vmem:[%s3 + $0x170] sm:$0xff]
      %v493 = vld [vmem:[%s3 + $0x178] sm:$0xff]
      %v494 = vld [vmem:[%s3 + $0x180] sm:$0xff]
      %v495 = vld [vmem:[%s3 + $0x188] sm:$0xff]
      %v496 = vld [vmem:[%s3 + $0x190] sm:$0xff]
      %v497 = vld [vmem:[%s3 + $0x198] sm:$0xff]
      %v498 = vld [vmem:[%s3 + $0x1a0] sm:$0xff]
      %v499 = vld [vmem:[%s3 + $0x1a8] sm:$0xff]
      %v500 = vld [vmem:[%s3 + $0x1b0] sm:$0xff]
      %v501 = vld [vmem:[%s3 + $0x1b8] sm:$0xff]
      %v502 = vld [vmem:[%s3 + $0x1c0] sm:$0xff]
      %v503 = vld [vmem:[%s3 + $0x1c8] sm:$0xff]
      %v504 = vld [vmem:[%s3 + $0x1d0] sm:$0xff]
      %v505 = vld [vmem:[%s3 + $0x1d8] sm:$0xff]
      %v506 = vld [vmem:[%s3 + $0x1e0] sm:$0xff]
      %v507 = vld [vmem:[%s3 + $0x1e8] sm:$0xff]
      %v508 = vld [vmem:[%s3 + $0x1f0] sm:$0xff]
      %v509 = vld [vmem:[%s3 + $0x1f8] sm:$0xff]
      %v510 = vld [vmem:[%s4] sm:$0x3]
      %v512 = vlaneseq
      %v513 = vshrl.u32 %v512, 7
      %v514 = vsub.s32 0, %v513
      %v515 = vrot.slane %v510, %v514
      %v516 = vlaneseq
      %v517 = vshrl.u32 %v516, 7
      %v518 = vsub.s32 1, %v517
      %v519 = vrot.slane %v510, %v518
      %522 = vmatprep.subr.mxu0 %v447
      %523 = vmatpush1.msra.mxu0 %v446
      %524 = vmatprep.subr.mxu0 %v449
      %525 = vmatpush1.msra.mxu0 %v448
      %526 = vmatprep.subr.mxu0 %v451
      %527 = vmatpush1.msra.mxu0 %v450
      %528 = vmatprep.subr.mxu0 %v453
      %529 = vmatpush1.msra.mxu0 %v452
      %530 = vmatprep.subr.mxu0 %v455
      %531 = vmatpush1.msra.mxu0 %v454
      %532 = vmatprep.subr.mxu0 %v457
      %533 = vmatpush1.msra.mxu0 %v456
      %534 = vmatprep.subr.mxu0 %v459
      %535 = vmatpush1.msra.mxu0 %v458
      %536 = vmatprep.subr.mxu0 %v461
      %537 = vmatpush1.msra.mxu0 %v460
      %538 = vmatprep.subr.mxu0 %v463
      %539 = vmatpush1.msra.mxu0 %v462
      %540 = vmatprep.subr.mxu0 %v465
      %541 = vmatpush1.msra.mxu0 %v464
      %542 = vmatprep.subr.mxu0 %v467
      %543 = vmatpush1.msra.mxu0 %v466
      %544 = vmatprep.subr.mxu0 %v469
      %545 = vmatpush1.msra.mxu0 %v468
      %546 = vmatprep.subr.mxu0 %v471
      %547 = vmatpush1.msra.mxu0 %v470
      %548 = vmatprep.subr.mxu0 %v473
      %549 = vmatpush1.msra.mxu0 %v472
      %550 = vmatprep.subr.mxu0 %v475
      %551 = vmatpush1.msra.mxu0 %v474
      %552 = vmatprep.subr.mxu0 %v477
      %553 = vmatpush1.msra.mxu0 %v476
      %554 = vmatprep.subr.mxu0 %v479
      %555 = vmatpush1.msra.mxu0 %v478
      %556 = vmatprep.subr.mxu0 %v481
      %557 = vmatpush1.msra.mxu0 %v480
      %558 = vmatprep.subr.mxu0 %v483
      %559 = vmatpush1.msra.mxu0 %v482
      %560 = vmatprep.subr.mxu0 %v485
      %561 = vmatpush1.msra.mxu0 %v484
      %562 = vmatprep.subr.mxu0 %v487
      %563 = vmatpush1.msra.mxu0 %v486
      %564 = vmatprep.subr.mxu0 %v489
      %565 = vmatpush1.msra.mxu0 %v488
      %566 = vmatprep.subr.mxu0 %v491
      %567 = vmatpush1.msra.mxu0 %v490
      %568 = vmatprep.subr.mxu0 %v493
      %569 = vmatpush1.msra.mxu0 %v492
      %570 = vmatprep.subr.mxu0 %v495
      %571 = vmatpush1.msra.mxu0 %v494
      %572 = vmatprep.subr.mxu0 %v497
      %573 = vmatpush1.msra.mxu0 %v496
      %574 = vmatprep.subr.mxu0 %v499
      %575 = vmatpush1.msra.mxu0 %v498
      %576 = vmatprep.subr.mxu0 %v501
      %577 = vmatpush1.msra.mxu0 %v500
      %578 = vmatprep.subr.mxu0 %v503
      %579 = vmatpush1.msra.mxu0 %v502
      %580 = vmatprep.subr.mxu0 %v505
      %581 = vmatpush1.msra.mxu0 %v504
      %582 = vmatprep.subr.mxu0 %v507
      %583 = vmatpush1.msra.mxu0 %v506
      %584 = vmatprep.subr.mxu0 %v509
      %585 = vmatpush1.msra.mxu0 %v508
      %586 = vmatprep.mubr.f32.mxu0 %v445
      %587 = vmatmul.mubr.f32.gmra.mrb[0].mxu0 %v444
      %v588 = vpop.f32.mrb[0].mxu0
      %v589 = vadd.f32 %v515, %v588
      %v590 = vpop.f32.mrb[0].mxu0
      %v591 = vadd.f32 %v519, %v590
      %592 = vdwg.mxu0
      %v593 = vmax.f32 %v589, 0.0
      %v594 = vmax.f32 %v591, 0.0
      %v595 = vld [vmem:[%s5] sm:$0xff]
      %v596 = vld [vmem:[%s5 + $0x8] sm:$0xff]
      %v597 = vld [vmem:[%s5 + $0x10] sm:$0xff]
      %v598 = vld [vmem:[%s5 + $0x18] sm:$0xff]
      %v599 = vld [vmem:[%s5 + $0x20] sm:$0xff]
      %v600 = vld [vmem:[%s5 + $0x28] sm:$0xff]
      %v601 = vld [vmem:[%s5 + $0x30] sm:$0xff]
      %v602 = vld [vmem:[%s5 + $0x38] sm:$0xff]
      %v603 = vld [vmem:[%s5 + $0x40] sm:$0xff]
      %v604 = vld [vmem:[%s5 + $0x48] sm:$0xff]
      %v605 = vld [vmem:[%s5 + $0x50] sm:$0xff]
      %v606 = vld [vmem:[%s5 + $0x58] sm:$0xff]
      %v607 = vld [vmem:[%s5 + $0x60] sm:$0xff]
      %v608 = vld [vmem:[%s5 + $0x68] sm:$0xff]
      %v609 = vld [vmem:[%s5 + $0x70] sm:$0xff]
      %v610 = vld [vmem:[%s5 + $0x78] sm:$0xff]
      %v611 = vld [vmem:[%s5 + $0x80] sm:$0xff]
      %v612 = vld [vmem:[%s5 + $0x88] sm:$0xff]
      %v613 = vld [vmem:[%s5 + $0x90] sm:$0xff]
      %v614 = vld [vmem:[%s5 + $0x98] sm:$0xff]
      %v615 = vld [vmem:[%s5 + $0xa0] sm:$0xff]
      %v616 = vld [vmem:[%s5 + $0xa8] sm:$0xff]
      %v617 = vld [vmem:[%s5 + $0xb0] sm:$0xff]
      %v618 = vld [vmem:[%s5 + $0xb8] sm:$0xff]
      %v619 = vld [vmem:[%s5 + $0xc0] sm:$0xff]
      %v620 = vld [vmem:[%s5 + $0xc8] sm:$0xff]
      %v621 = vld [vmem:[%s5 + $0xd0] sm:$0xff]
      %v622 = vld [vmem:[%s5 + $0xd8] sm:$0xff]
      %v623 = vld [vmem:[%s5 + $0xe0] sm:$0xff]
      %v624 = vld [vmem:[%s5 + $0xe8] sm:$0xff]
      %v625 = vld [vmem:[%s5 + $0xf0] sm:$0xff]
      %v626 = vld [vmem:[%s5 + $0xf8] sm:$0xff]
      %v627 = vld [vmem:[%s6] sm:$0x1]
      %v629 = vlaneseq
      %v630 = vshrl.u32 %v629, 7
      %v631 = vsub.s32 0, %v630
      %v632 = vrot.slane %v627, %v631
      %634 = vmatprep.subr.mxu0 0.0
      %635 = vmatpush1.msra.mxu0 %v595
      %636 = vmatprep.subr.mxu0 0.0
      %637 = vmatpush1.msra.mxu0 %v596
      %638 = vmatprep.subr.mxu0 0.0
      %639 = vmatpush1.msra.mxu0 %v597
      %640 = vmatprep.subr.mxu0 0.0
      %641 = vmatpush1.msra.mxu0 %v598
      %642 = vmatprep.subr.mxu0 0.0
      %643 = vmatpush1.msra.mxu0 %v599
      %644 = vmatprep.subr.mxu0 0.0
      %645 = vmatpush1.msra.mxu0 %v600
      %646 = vmatprep.subr.mxu0 0.0
      %647 = vmatpush1.msra.mxu0 %v601
      %648 = vmatprep.subr.mxu0 0.0
      %649 = vmatpush1.msra.mxu0 %v602
      %650 = vmatprep.subr.mxu0 0.0
      %651 = vmatpush1.msra.mxu0 %v603
      %652 = vmatprep.subr.mxu0 0.0
      %653 = vmatpush1.msra.mxu0 %v604
      %654 = vmatprep.subr.mxu0 0.0
      %655 = vmatpush1.msra.mxu0 %v605
      %656 = vmatprep.subr.mxu0 0.0
      %657 = vmatpush1.msra.mxu0 %v606
      %658 = vmatprep.subr.mxu0 0.0
      %659 = vmatpush1.msra.mxu0 %v607
      %660 = vmatprep.subr.mxu0 0.0
      %661 = vmatpush1.msra.mxu0 %v608
      %662 = vmatprep.subr.mxu0 0.0
      %663 = vmatpush1.msra.mxu0 %v609
      %664 = vmatprep.subr.mxu0 0.0
      %665 = vmatpush1.msra.mxu0 %v610
      %666 = vmatprep.subr.mxu0 0.0
      %667 = vmatpush1.msra.mxu0 %v611
      %668 = vmatprep.subr.mxu0 0.0
      %669 = vmatpush1.msra.mxu0 %v612
      %670 = vmatprep.subr.mxu0 0.0
      %671 = vmatpush1.msra.mxu0 %v613
      %672 = vmatprep.subr.mxu0 0.0
      %673 = vmatpush1.msra.mxu0 %v614
      %674 = vmatprep.subr.mxu0 0.0
      %675 = vmatpush1.msra.mxu0 %v615
      %676 = vmatprep.subr.mxu0 0.0
      %677 = vmatpush1.msra.mxu0 %v616
      %678 = vmatprep.subr.mxu0 0.0
      %679 = vmatpush1.msra.mxu0 %v617
      %680 = vmatprep.subr.mxu0 0.0
      %681 = vmatpush1.msra.mxu0 %v618
      %682 = vmatprep.subr.mxu0 0.0
      %683 = vmatpush1.msra.mxu0 %v619
      %684 = vmatprep.subr.mxu0 0.0
      %685 = vmatpush1.msra.mxu0 %v620
      %686 = vmatprep.subr.mxu0 0.0
      %687 = vmatpush1.msra.mxu0 %v621
      %688 = vmatprep.subr.mxu0 0.0
      %689 = vmatpush1.msra.mxu0 %v622
      %690 = vmatprep.subr.mxu0 0.0
      %691 = vmatpush1.msra.mxu0 %v623
      %692 = vmatprep.subr.mxu0 0.0
      %693 = vmatpush1.msra.mxu0 %v624
      %694 = vmatprep.subr.mxu0 0.0
      %695 = vmatpush1.msra.mxu0 %v625
      %696 = vmatprep.subr.mxu0 0.0
      %697 = vmatpush1.msra.mxu0 %v626
      %698 = vmatprep.mubr.f32.mxu0 %v594
      %699 = vmatmul.mubr.f32.gmra.mrb[0].mxu0 %v593
      %v700 = vpop.f32.mrb[0].mxu0
      %v701 = vadd.f32 %v632, %v700
      %v702 = vpop.f32.mrb[0].mxu0
      %703 = vdwg.mxu0
      %v704 = vmax.f32 %v701, 0.0
      %v705 = vld [vmem:[%s7] sm:$0xff]
      %v706 = vld [vmem:[%s7 + $0x8] sm:$0xff]
      %v707 = vld [vmem:[%s7 + $0x10] sm:$0xff]
      %v708 = vld [vmem:[%s7 + $0x18] sm:$0xff]
      %v709 = vld [vmem:[%s7 + $0x20] sm:$0xff]
      %v710 = vld [vmem:[%s7 + $0x28] sm:$0xff]
      %v711 = vld [vmem:[%s7 + $0x30] sm:$0xff]
      %v712 = vld [vmem:[%s7 + $0x38] sm:$0xff]
      %v713 = vld [vmem:[%s7 + $0x40] sm:$0xff]
      %v714 = vld [vmem:[%s7 + $0x48] sm:$0xff]
      %v715 = vld [vmem:[%s7 + $0x50] sm:$0xff]
      %v716 = vld [vmem:[%s7 + $0x58] sm:$0xff]
      %v717 = vld [vmem:[%s7 + $0x60] sm:$0xff]
      %v718 = vld [vmem:[%s7 + $0x68] sm:$0xff]
      %v719 = vld [vmem:[%s7 + $0x70] sm:$0xff]
      %v720 = vld [vmem:[%s7 + $0x78] sm:$0xff]
      %v721 = vld [vmem:[%s8] sm:$0x1]
      %v723 = vlaneseq
      %v724 = vshrl.u32 %v723, 7
      %v725 = vsub.s32 0, %v724
      %v726 = vrot.slane %v721, %v725
      %728 = vmatprep.subr.mxu0 0.0
      %729 = vmatpush1.msra.mxu0 %v705
      %730 = vmatprep.subr.mxu0 0.0
      %731 = vmatpush1.msra.mxu0 %v706
      %732 = vmatprep.subr.mxu0 0.0
      %733 = vmatpush1.msra.mxu0 %v707
      %734 = vmatprep.subr.mxu0 0.0
      %735 = vmatpush1.msra.mxu0 %v708
      %736 = vmatprep.subr.mxu0 0.0
      %737 = vmatpush1.msra.mxu0 %v709
      %738 = vmatprep.subr.mxu0 0.0
      %739 = vmatpush1.msra.mxu0 %v710
      %740 = vmatprep.subr.mxu0 0.0
      %741 = vmatpush1.msra.mxu0 %v711
      %742 = vmatprep.subr.mxu0 0.0
      %743 = vmatpush1.msra.mxu0 %v712
      %744 = vmatprep.subr.mxu0 0.0
      %745 = vmatpush1.msra.mxu0 %v713
      %746 = vmatprep.subr.mxu0 0.0
      %747 = vmatpush1.msra.mxu0 %v714
      %748 = vmatprep.subr.mxu0 0.0
      %749 = vmatpush1.msra.mxu0 %v715
      %750 = vmatprep.subr.mxu0 0.0
      %751 = vmatpush1.msra.mxu0 %v716
      %752 = vmatprep.subr.mxu0 0.0
      %753 = vmatpush1.msra.mxu0 %v717
      %754 = vmatprep.subr.mxu0 0.0
      %755 = vmatpush1.msra.mxu0 %v718
      %756 = vmatprep.subr.mxu0 0.0
      %757 = vmatpush1.msra.mxu0 %v719
      %758 = vmatprep.subr.mxu0 0.0
      %759 = vmatpush1.msra.mxu0 %v720
      %760 = vmatprep.subr.mxu0 0.0
      %761 = vmatpush1.msra.mxu0 0.0
      %762 = vmatprep.subr.mxu0 0.0
      %763 = vmatpush1.msra.mxu0 0.0
      %764 = vmatprep.subr.mxu0 0.0
      %765 = vmatpush1.msra.mxu0 0.0
      %766 = vmatprep.subr.mxu0 0.0
      %767 = vmatpush1.msra.mxu0 0.0
      %768 = vmatprep.subr.mxu0 0.0
      %769 = vmatpush1.msra.mxu0 0.0
      %770 = vmatprep.subr.mxu0 0.0
      %771 = vmatpush1.msra.mxu0 0.0
      %772 = vmatprep.subr.mxu0 0.0
      %773 = vmatpush1.msra.mxu0 0.0
      %774 = vmatprep.subr.mxu0 0.0
      %775 = vmatpush1.msra.mxu0 0.0
      %776 = vmatprep.subr.mxu0 0.0
      %777 = vmatpush1.msra.mxu0 0.0
      %778 = vmatprep.subr.mxu0 0.0
      %779 = vmatpush1.msra.mxu0 0.0
      %780 = vmatprep.subr.mxu0 0.0
      %781 = vmatpush1.msra.mxu0 0.0
      %782 = vmatprep.subr.mxu0 0.0
      %783 = vmatpush1.msra.mxu0 0.0
      %784 = vmatprep.subr.mxu0 0.0
      %785 = vmatpush1.msra.mxu0 0.0
      %786 = vmatprep.subr.mxu0 0.0
      %787 = vmatpush1.msra.mxu0 0.0
      %788 = vmatprep.subr.mxu0 0.0
      %789 = vmatpush1.msra.mxu0 0.0
      %790 = vmatprep.subr.mxu0 0.0
      %791 = vmatpush1.msra.mxu0 0.0
      %792 = vmatprep.mubr.f32.mxu0 0.0
      %793 = vmatmul.mubr.f32.gmra.mrb[0].mxu0 %v704
      %v794 = vpop.f32.mrb[0].mxu0
      %v795 = vadd.f32 %v726, %v794
      %v796 = vpop.f32.mrb[0].mxu0
      %797 = vdwg.mxu0
      %vm798 = vcmask 261120
      %799 = vst.msk [vmem:[%s327] sm:$0xff] %vm798, %v795
      %p800 = scmp.lt.s32.totalorder %s20, 1
      %s801 = scalar_select %p800, %s20, 1
      %s802 = smul.addr %s801, 8
      %s803 = scalar_lea.vmem %s9, %s802
      // Predicated region
      $region57: #{mlp_forward.1} parent=55 // pred_check
        %p804 = pneg %p232
      $region58: #{mlp_forward.1} parent=55 // pred_check_branch
        %806 = sbr.rel (%p804) target = $region60
      $region59: #{mlp_forward.1} parent=55 // pred_region
        _
      $region60: #{mlp_forward.1} parent=55 // pred_fallthru
        _
    $region56: #{mlp_forward.1} parent=5 // pred_fallthru
      _
    %p807 = scmp.le.s32.totalorder 2, %s15
    // Predicated region
    $region61: #{mlp_forward.1} parent=5 // pred_check
      %p808 = pneg %p807
    $region62: #{mlp_forward.1} parent=5 // pred_check_branch
      %810 = sbr.rel (%p808) target = $region64
    $region63: #{mlp_forward.1} parent=5 // pred_region
      %s811 = ssub.s32 %s15, 2
      // Predicated region
      $region65: #{mlp_forward.1} parent=63 // pred_check
        %p812 = pneg %p238
      $region66: #{mlp_forward.1} parent=63 // pred_check_branch
        %814 = sbr.rel (%p812) target = $region68
      $region67: #{mlp_forward.1} parent=63 // pred_region
        %p815 = scmp.lt.s32.totalorder %s21, 1
        %s816 = scalar_select %p815, %s21, 1
        %s817 = smul.addr %s816, 8
        %s818 = scalar_lea.vmem %s9, %s817
      $region68: #{mlp_forward.1} parent=63 // pred_fallthru
        _
    $region64: #{mlp_forward.1} parent=5 // pred_fallthru
      _
  $region6: #{mlp_forward.1} parent=0 // loop_footer
    %s19 = sadd.s32 1, %s15
  $region7: #{mlp_forward.1} parent=0 // loop_footer_branch
    %14 = sbr.rel target = $region3
  $region8: #{mlp_forward.1} parent=0 // loop_exit
    _

</llo_original>
